<compile_context>
chip_gen: v7x
topology: tpu7x:2x2x1
jax: 0.10.0
libtpu: 0.0.40
codegen_flags: <defaults>
</compile_context>

<pallas_src>
import jax
import jax.numpy as jnp
from jax.experimental import pallas as pl
from jax.experimental.pallas import tpu as pltpu


# ---------------------------------------------------------------------------
# Pallas kernel: fused (concat +) 1x1 conv + bias + ReLU in Cout-major form.
#   w: (Cp, Cin), x: (Cin, tile_m)  [batch grid dim squeezed], b: (Cp, 1)
#   o: (Cp, tile_m)
# ---------------------------------------------------------------------------
def _skip_conn_kernel(w_ref, x_ref, b_ref, o_ref):
    acc = jnp.dot(w_ref[...], x_ref[...], preferred_element_type=jnp.float32)
    o_ref[...] = jnp.maximum(acc + b_ref[...], 0.0)


def skip_connection_2d(x1, x2, w, b, *, tile_m=None):
    """x1: (B, C1, H, W), x2: (B, C2, H, W), w: (Cout, C1+C2, 1, 1), b: (Cout,)."""
    B, C1, H, W_ = x1.shape
    C2 = x2.shape[1]
    Cout = w.shape[0]
    Cin = C1 + C2
    HW = H * W_

    # Conv2d 1x1 weight -> (Cout, Cin) matmul weight; pad Cout to 8 sublanes only.
    Cp = ((Cout + 7) // 8) * 8
    wp = jnp.pad(w[:, :, 0, 0].astype(jnp.float32), ((0, Cp - Cout), (0, 0)))       # (Cp, Cin)
    bp = jnp.pad(b.astype(jnp.float32).reshape(Cout, 1), ((0, Cp - Cout), (0, 0)))  # (Cp, 1)

    # NCHW is already channel-major per batch: flatten spatial dims and concat
    # channels once -- no activation transpose on input or output.
    xcat = jnp.concatenate(
        [x1.reshape(B, C1, HW), x2.reshape(B, C2, HW)], axis=1
    ).astype(jnp.float32)                                                            # (B, Cin, HW)

    if tile_m is None:
        # Lane-dim tile over pixels; together with the batch grid axis this gives
        # >= 2 "parallel" steps for B >= 2 (v7x megacore), capped for VMEM headroom.
        tile_m = min(1024, ((HW + 127) // 128) * 128)
    HWp = pl.cdiv(HW, tile_m) * tile_m
    if HWp != HW:
        xcat = jnp.pad(xcat, ((0, 0), (0, 0), (0, HWp - HW)))

    # Real (unpadded) work, so XLA can schedule the surrounding glue sensibly.
    flops = 2 * B * HW * Cin * Cout
    bytes_accessed = 4 * (B * HW * Cin + Cin * Cout + Cout + B * HW * Cout)

    out = pl.pallas_call(
        _skip_conn_kernel,
        out_shape=jax.ShapeDtypeStruct((B, Cp, HWp), jnp.float32),
        grid_spec=pltpu.PrefetchScalarGridSpec(
            num_scalar_prefetch=0,
            grid=(B, HWp // tile_m),
            in_specs=[
                pl.BlockSpec((Cp, Cin), lambda bb, mm: (0, 0)),        # weight, resident
                pl.BlockSpec((pl.Squeezed(), Cin, tile_m),
                             lambda bb, mm: (bb, 0, mm)),              # activations
                pl.BlockSpec((Cp, 1), lambda bb, mm: (0, 0)),          # bias, resident
            ],
            out_specs=pl.BlockSpec((pl.Squeezed(), Cp, tile_m),
                                   lambda bb, mm: (bb, 0, mm)),
        ),
        compiler_params=pltpu.CompilerParams(
            dimension_semantics=("parallel", "parallel")),
        cost_estimate=pl.CostEstimate(
            flops=flops, transcendentals=0, bytes_accessed=bytes_accessed),
    )(wp, xcat, bp)

    # Drop out-channel / pixel padding; result is already NCHW (no transpose).
    # Padded pixel columns hold ReLU(bias) junk and padded channels hold zeros;
    # both are sliced off here.
    return out[:, :Cout, :HW].reshape(B, Cout, H, W_)


# ---------------------------------------------------------------------------
# Pure-JAX reference: concat -> 1x1 conv -> ReLU (exactly the PyTorch forward)
# ---------------------------------------------------------------------------
def ref_forward(x1, x2, w, b):
    xcat = jnp.concatenate([x1, x2], axis=1)                            # (B, C1+C2, H, W)
    y = jnp.einsum("bchw,oc->bohw", xcat, w[:, :, 0, 0],
                   precision=jax.lax.Precision.HIGHEST)
    y = y + b[None, :, None, None]
    return jnp.maximum(y, 0.0)


if __name__ == "__main__":
    B, C1, C2, H, W_ = 2, 8, 8, 16, 16
    Cout = 16

    key = jax.random.PRNGKey(0)
    k1, k2, k3, k4 = jax.random.split(key, 4)

    x1 = jax.random.normal(k1, (B, C1, H, W_), jnp.float32)
    x2 = jax.random.normal(k2, (B, C2, H, W_), jnp.float32)
    w = 0.3 * jax.random.normal(k3, (Cout, C1 + C2, 1, 1), jnp.float32)   # Conv2d 1x1 weight
    b = 0.1 * jax.random.normal(k4, (Cout,), jnp.float32)                 # Conv2d bias

    out = jax.block_until_ready(skip_connection_2d(x1, x2, w, b))
    ref = jax.block_until_ready(ref_forward(x1, x2, w, b))

    assert out.shape == (B, Cout, H, W_), out.shape
    assert jnp.allclose(out, ref, rtol=1e-3, atol=1e-3), (
        float(jnp.max(jnp.abs(out - ref))))
    print("KERNEL_OK")
</pallas_src>

<mosaic_0001>
module attributes {stable_mosaic.version = 11 : i64} {
  func.func @_skip_conn_kernel(%arg0: i32, %arg1: i32, %arg2: memref<16x16xf32, #tpu.memory_space<vmem>>, %arg3: memref<1x16x256xf32, #tpu.memory_space<vmem>>, %arg4: memref<16x1xf32, #tpu.memory_space<vmem>>, %arg5: memref<1x16x256xf32, #tpu.memory_space<vmem>>) attributes {dimension_semantics = [#tpu.dimension_semantics<parallel>, #tpu.dimension_semantics<parallel>], iteration_bounds = array<i64: 2, 1>, scalar_prefetch = 0 : i64, scratch_operands = 0 : i64, tpu.core_type = #tpu.core_type<tc>, window_params = [{pipeline_mode = #tpu.pipeline_mode<synchronous>, transform_indices = @transform_0, window_bounds = array<i64: 16, 16>}, {transform_indices = @transform_1, window_bounds = array<i64: 1, 16, 256>}, {pipeline_mode = #tpu.pipeline_mode<synchronous>, transform_indices = @transform_2, window_bounds = array<i64: 16, 1>}, {transform_indices = @transform_3, window_bounds = array<i64: 1, 16, 256>}]} {
    %c0 = arith.constant 0 : index
    %c0_0 = arith.constant 0 : index
    %0 = vector.load %arg2[%c0, %c0_0] : memref<16x16xf32, #tpu.memory_space<vmem>>, vector<16x16xf32>
    %c0_1 = arith.constant 0 : index
    %c0_2 = arith.constant 0 : index
    %c0_3 = arith.constant 0 : index
    %1 = vector.load %arg3[%c0_1, %c0_2, %c0_3] : memref<1x16x256xf32, #tpu.memory_space<vmem>>, vector<1x16x256xf32>
    %2 = vector.shape_cast %1 : vector<1x16x256xf32> to vector<16x256xf32>
    %cst = arith.constant dense<0.000000e+00> : vector<16x256xf32>
    %3 = tpu.matmul %0, %2, %cst {dimension_numbers = #tpu.dot_dimension_numbers<[1], [0], [0], [1], [0, 0, 1, 1], [], []>} : vector<16x16xf32>, vector<16x256xf32>, vector<16x256xf32> -> vector<16x256xf32>
    %c0_4 = arith.constant 0 : index
    %c0_5 = arith.constant 0 : index
    %4 = vector.load %arg4[%c0_4, %c0_5] : memref<16x1xf32, #tpu.memory_space<vmem>>, vector<16x1xf32>
    %5 = vector.broadcast %4 : vector<16x1xf32> to vector<16x256xf32>
    %6 = arith.addf %3, %5 : vector<16x256xf32>
    %cst_6 = arith.constant 0.000000e+00 : f32
    %7 = vector.broadcast %cst_6 : f32 to vector<16x256xf32>
    %8 = arith.maximumf %6, %7 : vector<16x256xf32>
    %c0_7 = arith.constant 0 : index
    %c0_8 = arith.constant 0 : index
    %c0_9 = arith.constant 0 : index
    %9 = vector.load %arg5[%c0_7, %c0_8, %c0_9] : memref<1x16x256xf32, #tpu.memory_space<vmem>>, vector<1x16x256xf32>
    %10 = vector.shape_cast %9 : vector<1x16x256xf32> to vector<16x256xf32>
    %11 = vector.shape_cast %8 : vector<16x256xf32> to vector<1x16x256xf32>
    tpu.vector_store %arg5[%c0_7, %c0_8, %c0_9], %11 {strides = array<i32>} : memref<1x16x256xf32, #tpu.memory_space<vmem>>, vector<1x16x256xf32>,
    return
  }
  func.func @transform_0(%arg0: i32, %arg1: i32) -> (i32, i32) {
    %c0_i32 = arith.constant 0 : i32
    %c0_i32_0 = arith.constant 0 : i32
    %c0_i32_1 = arith.constant 0 : i32
    return %c0_i32, %c0_i32_0 : i32, i32
  }
  func.func @transform_1(%arg0: i32, %arg1: i32) -> (i32, i32, i32) {
    %c0_i32 = arith.constant 0 : i32
    %c0_i32_0 = arith.constant 0 : i32
    return %arg0, %c0_i32, %arg1 : i32, i32, i32
  }
  func.func @transform_2(%arg0: i32, %arg1: i32) -> (i32, i32) {
    %c0_i32 = arith.constant 0 : i32
    %c0_i32_0 = arith.constant 0 : i32
    %c0_i32_1 = arith.constant 0 : i32
    return %c0_i32, %c0_i32_0 : i32, i32
  }
  func.func @transform_3(%arg0: i32, %arg1: i32) -> (i32, i32, i32) {
    %c0_i32 = arith.constant 0 : i32
    %c0_i32_0 = arith.constant 0 : i32
    return %arg0, %c0_i32, %arg1 : i32, i32, i32
  }
}

</mosaic_0001>

<llo_original>
// kernel: tpu_custom_call.1
$region0: #{tpu_custom_call.1}
  #allocation0 [shape = 'u32[]', space=smem, size = 0x4, offset = 0x4, fixed_abs, tag = 'smem constant byte address 0x4 - core index']
  #allocation1 [shape = 'u32[144,128]{1,0:T(1,128)}', space=vmem, size = 0x12000, scoped, tag = 'internal scratch']
  %s0 = inlined_call_operand.vmem [shape: f32[16,16], index: 0, kind: input, shape index: {}]
  %s1 = inlined_call_operand.hbm [shape: f32[2,16,256], index: 1, kind: input, shape index: {}]
  %s2 = inlined_call_operand.vmem [shape: f32[16,1], index: 2, kind: input, shape index: {}]
  %s3 = inlined_call_operand.hbm [shape: f32[2,16,256], index: 3, kind: output, shape index: {}]
  %s4 = sld [smem:[#allocation0]]
  $region49: #{tpu_custom_call.1} parent=0
    _
  %s6 = ssub.s32 1, %s4
  %s7 = scalar_select 0, %s6, %s4
  $region1: #{tpu_custom_call.1} parent=0
    #allocation2 [shape = 'u8[32768]{0}', space=vmem, size = 0x8000, scoped, tag = 'input window, operand 1']
    #allocation3 [shape = 's32[2]{0}', space=sflag, size = 0x8, scoped, tag = 'scoped memory for tpu_custom_call.1']
    #allocation4 [shape = 's32[2]{0}', space=sflag, size = 0x8, scoped, tag = 'scoped memory for tpu_custom_call.1']
    #allocation5 [shape = 'u8[32768]{0}', space=vmem, size = 0x8000, scoped, tag = 'output window, operand 0']
    %8 = vsyncpa [#allocation3], 0
    %s9 = scalar_lea.sflag [#allocation3], 1
    %10 = vsyncpa %s9, 0
    %11 = vsyncpa [#allocation4], 0
    %s12 = scalar_lea.sflag [#allocation4], 1
    %13 = vsyncpa %s12, 0
    loop: start=0, step=1, limit=4
    $region2: #{tpu_custom_call.1} parent=1 // loop_pre_header
      _
    $region3: #{tpu_custom_call.1} parent=1 // loop_header
      %s15 = sphi 0, %s19
      %p16 = scmp.ge.s32.totalorder %s15, 4
      %s22 = sphi 0, %s34
      %s23 = sphi 0, %s30
      %s24 = sphi 0, %s22
      %s25 = sphi 0, %s23
      %s26 = sphi 0, %s24
      %s27 = sphi 0, %s25
      %s35 = sphi 0, %s35
      %s37 = sphi 0, %s35
      %s38 = sphi 0, %s37
      %s52 = sphi 0, %s38
      %s60 = sphi 0, %s62
      %s63 = sphi 0, %s60
      %s64 = sphi 0, %s63
      %s80 = sphi 0, %s64
      %s84 = sphi 0, %s84
      %s86 = sphi 0, %s84
      %s87 = sphi 0, %s86
      %s101 = sphi 0, %s87
      %s109 = sphi 0, %s111
      %s112 = sphi 0, %s109
      %s113 = sphi 0, %s112
      %s129 = sphi 0, %s113
    $region4: #{tpu_custom_call.1} parent=1 // loop_header_branch
      %18 = sbr.rel (%p16) target = $region8
    $region5: #{tpu_custom_call.1} parent=1 // loop_body
      %s20 = ssub.s32 %s15, 1
      %s21 = ssub.s32 %s15, 2
      %s28 = sadd.s32 1, %s23
      %p29 = scmp.ge.s32.totalorder %s28, 1
      %s30 = scalar_select %p29, 0, %s28
      %s31 = sadd.s32 1, %s22
      %s32 = scalar_select %p29, %s31, %s22
      %p33 = scmp.ge.s32.totalorder %s32, 2
      %s34 = scalar_select %p33, 0, %s32
      %s36 = sadd.s32 %s35, 1
      %p39 = scmp.eq.s32.totalorder %s15, 1
      %p40 = scmp.ne.s32.totalorder %s35, %s37
      %p41 = scmp.eq.s32.totalorder %s15, 0
      %p42 = por %p40, %p41
      %p43 = scmp.ne.s32.totalorder %s35, %s37
      %p44 = scmp.eq.s32.totalorder %s20, 1
      %p45 = por %p43, %p44
      %p46 = scmp.ne.s32.totalorder %s37, %s38
      %p47 = scmp.eq.s32.totalorder %s20, 0
      %p48 = por %p46, %p47
      %p49 = scmp.ne.s32.totalorder %s37, %s38
      %p50 = scmp.eq.s32.totalorder %s21, 1
      %p51 = por %p49, %p50
      %p53 = scmp.ne.s32.totalorder %s38, %s52
      %p54 = scmp.eq.s32.totalorder %s21, 0
      %p55 = por %p53, %p54
      %s56 = ssub.s32 %s22, %s34
      %s57 = ssub.s32 %s23, %s30
      %s58 = sor.u32 %s56, %s57
      %p59 = scmp.eq.s32.totalorder %s58, 0
      %s61 = sadd.s32 %s60, 1
      %s62 = scalar_select %p59, %s60, %s61
      %p65 = pneg %p59
      %p66 = scmp.eq.s32.totalorder %s15, 1
      %p67 = por %p65, %p66
      %p68 = scmp.ne.s32.totalorder %s60, %s63
      %p69 = scmp.eq.s32.totalorder %s15, 0
      %p70 = por %p68, %p69
      %p71 = scmp.ne.s32.totalorder %s60, %s63
      %p72 = scmp.eq.s32.totalorder %s20, 1
      %p73 = por %p71, %p72
      %p74 = scmp.ne.s32.totalorder %s63, %s64
      %p75 = scmp.eq.s32.totalorder %s20, 0
      %p76 = por %p74, %p75
      %p77 = scmp.ne.s32.totalorder %s63, %s64
      %p78 = scmp.eq.s32.totalorder %s21, 1
      %p79 = por %p77, %p78
      %p81 = scmp.ne.s32.totalorder %s64, %s80
      %p82 = scmp.eq.s32.totalorder %s21, 0
      %p83 = por %p81, %p82
      %s85 = sadd.s32 %s84, 1
      %p88 = scmp.eq.s32.totalorder %s15, 1
      %p89 = scmp.ne.s32.totalorder %s84, %s86
      %p90 = scmp.eq.s32.totalorder %s15, 0
      %p91 = por %p89, %p90
      %p92 = scmp.ne.s32.totalorder %s84, %s86
      %p93 = scmp.eq.s32.totalorder %s20, 1
      %p94 = por %p92, %p93
      %p95 = scmp.ne.s32.totalorder %s86, %s87
      %p96 = scmp.eq.s32.totalorder %s20, 0
      %p97 = por %p95, %p96
      %p98 = scmp.ne.s32.totalorder %s86, %s87
      %p99 = scmp.eq.s32.totalorder %s21, 1
      %p100 = por %p98, %p99
      %p102 = scmp.ne.s32.totalorder %s87, %s101
      %p103 = scmp.eq.s32.totalorder %s21, 0
      %p104 = por %p102, %p103
      %s105 = ssub.s32 %s22, %s34
      %s106 = ssub.s32 %s23, %s30
      %s107 = sor.u32 %s105, %s106
      %p108 = scmp.eq.s32.totalorder %s107, 0
      %s110 = sadd.s32 %s109, 1
      %s111 = scalar_select %p108, %s109, %s110
      %p114 = pneg %p108
      %p115 = scmp.eq.s32.totalorder %s15, 1
      %p116 = por %p114, %p115
      %p117 = scmp.ne.s32.totalorder %s109, %s112
      %p118 = scmp.eq.s32.totalorder %s15, 0
      %p119 = por %p117, %p118
      %p120 = scmp.ne.s32.totalorder %s109, %s112
      %p121 = scmp.eq.s32.totalorder %s20, 1
      %p122 = por %p120, %p121
      %p123 = scmp.ne.s32.totalorder %s112, %s113
      %p124 = scmp.eq.s32.totalorder %s20, 0
      %p125 = por %p123, %p124
      %p126 = scmp.ne.s32.totalorder %s112, %s113
      %p127 = scmp.eq.s32.totalorder %s21, 1
      %p128 = por %p126, %p127
      %p130 = scmp.ne.s32.totalorder %s113, %s129
      %p131 = scmp.eq.s32.totalorder %s21, 0
      %p132 = por %p130, %p131
      %p133 = scmp.le.s32.totalorder 1, %s15
      %p134 = scmp.lt.s32.totalorder %s15, 3
      %p135 = pnand %p133, %p134
      %p136 = pneg %p135
      // Predicated region
      $region9: #{tpu_custom_call.1} parent=5 // pred_check
        _
      $region10: #{tpu_custom_call.1} parent=5 // pred_check_branch
        %138 = sbr.rel (%p135) target = $region12
      $region11: #{tpu_custom_call.1} parent=5 // pred_region
        %s139 = ssub.s32 %s15, 1
        // Predicated region
        $region13: #{tpu_custom_call.1} parent=11 // pred_check
          %p140 = pneg %p48
        $region14: #{tpu_custom_call.1} parent=11 // pred_check_branch
          %142 = sbr.rel (%p140) target = $region16
        $region15: #{tpu_custom_call.1} parent=11 // pred_region
          _
        $region16: #{tpu_custom_call.1} parent=11 // pred_fallthru
          _
        // Predicated region
        $region17: #{tpu_custom_call.1} parent=11 // pred_check
          %p143 = pneg %p97
        $region18: #{tpu_custom_call.1} parent=11 // pred_check_branch
          %145 = sbr.rel (%p143) target = $region20
        $region19: #{tpu_custom_call.1} parent=11 // pred_region
          _
        $region20: #{tpu_custom_call.1} parent=11 // pred_fallthru
          _
      $region12: #{tpu_custom_call.1} parent=5 // pred_fallthru
        _
      %p146 = scmp.lt.s32.totalorder %s15, 2
      // Predicated region
      $region21: #{tpu_custom_call.1} parent=5 // pred_check
        %p147 = pneg %p146
      $region22: #{tpu_custom_call.1} parent=5 // pred_check_branch
        %149 = sbr.rel (%p147) target = $region24
      $region23: #{tpu_custom_call.1} parent=5 // pred_region
        // Predicated region
        $region25: #{tpu_custom_call.1} parent=23 // pred_check
          %p150 = pneg %p70
        $region26: #{tpu_custom_call.1} parent=23 // pred_check_branch
          %152 = sbr.rel (%p150) target = $region28
        $region27: #{tpu_custom_call.1} parent=23 // pred_region
          %s153 = sand.u32 %s60, 1
          %s154 = scalar_lea.sflag [#allocation3], %s153
          %s155 = sand.u32 %s60, 1
          %s156 = smul.addr %s155, 32
          %s157 = scalar_lea.vmem [#allocation2], %s156
          %s158 = smul.u32 2, %s23
          %s160 = ssub.s32 512, 512
          %161 = vsyncadd %s154, %s160
          %s162 = smul.addr %s22, 4
          %s163 = sadd.s32 %s158, %s162
          %s164 = smul.addr %s163, 128
          %s165 = scalar_lea.hbm %s1, %s164
          %s166 = sshll.u32 %s157, 4
          %s167 = int_to_ptr.vmem [resolvable:$true] %s166
          %172 = dma.hbm_to_vmem [thread:$0]  %s165, 512, %s167, %s154, 256, 256, 16
        $region28: #{tpu_custom_call.1} parent=23 // pred_fallthru
          _
      $region24: #{tpu_custom_call.1} parent=5 // pred_fallthru
        _
      %p173 = scmp.le.s32.totalorder 1, %s15
      %p174 = scmp.lt.s32.totalorder %s15, 3
      %p175 = pnand %p173, %p174
      %p176 = pneg %p175
      // Predicated region
      $region29: #{tpu_custom_call.1} parent=5 // pred_check
        _
      $region30: #{tpu_custom_call.1} parent=5 // pred_check_branch
        %178 = sbr.rel (%p175) target = $region32
      $region31: #{tpu_custom_call.1} parent=5 // pred_region
        %s179 = ssub.s32 %s15, 1
        %s180 = sand.u32 %s63, 1
        %s181 = scalar_lea.sflag [#allocation3], %s180
        %s182 = sand.u32 %s63, 1
        %s183 = smul.addr %s182, 32
        %s184 = scalar_lea.vmem [#allocation2], %s183
        // Predicated region
        $region33: #{tpu_custom_call.1} parent=31 // pred_check
          %p185 = pneg %p76
        $region34: #{tpu_custom_call.1} parent=31 // pred_check_branch
          %187 = sbr.rel (%p185) target = $region36
        $region35: #{tpu_custom_call.1} parent=31 // pred_region
          %188 = dma.done %s181, 512
        $region36: #{tpu_custom_call.1} parent=31 // pred_fallthru
          _
        %p189 = pneg %p48
        %p190 = pneg %p45
        %s191 = sand.u32 %s63, 1
        %s192 = scalar_lea.sflag [#allocation3], %s191
        %s193 = sand.u32 %s63, 1
        %s194 = smul.addr %s193, 32
        %s195 = scalar_lea.vmem [#allocation2], %s194
        %p196 = pneg %p76
        %p197 = pneg %p73
        %p198 = pneg %p97
        %p199 = pneg %p94
        %p200 = pneg %p125
        %p201 = pneg %p122
        %s202 = sand.u32 %s112, 1
        %s203 = scalar_lea.sflag [#allocation4], %s202
        %s204 = sand.u32 %s112, 1
        %s205 = smul.addr %s204, 32
        %s206 = scalar_lea.vmem [#allocation5], %s205
        %s207 = smul.u32 2, %s25
        %s208 = smul.u32 2, %s25
        %v209 = vld [vmem:[%s0] sm:$0xff]
        %v210 = vld [vmem:[%s0 + $0x8] sm:$0xff]
        %v211 = vld [vmem:[%s184] sm:$0xff]
        %v212 = vld [vmem:[%s184 + $0x8] sm:$0xff]
        %v213 = vld [vmem:[%s184 + $0x10] sm:$0xff]
        %v214 = vld [vmem:[%s184 + $0x18] sm:$0xff]
        %v215 = vld [vmem:[%s2] sm:$0xff]
        %v216 = vld [vmem:[%s2 + $0x8] sm:$0xff]
        %218 = vset.pattern.permute.xlu0 0
        %219 = vperm.xlu0 %218, %v215
        %v220 = vpop.permute.xlu0 %219
        %223 = vset.pattern.permute.xlu0 0
        %224 = vperm.xlu0 %223, %v216
        %v225 = vpop.permute.xlu0 %224
        %vm227 = vcmask 130048
        %v229 = vsel %vm227, %v209, 0
        %v232 = vsel %vm227, %v210, 0
        %234 = vmatprep.subr.mxu0 %v212
        %235 = vmatpush1.msra.mxu0 %v211
        %236 = vmatprep.subr.mxu0 %v214
        %237 = vmatpush1.msra.mxu0 %v213
        %238 = vmatprep.subr.mxu0 0.0
        %239 = vmatpush1.msra.mxu0 0.0
        %240 = vmatprep.subr.mxu0 0.0
        %241 = vmatpush1.msra.mxu0 0.0
        %242 = vmatprep.subr.mxu0 0.0
        %243 = vmatpush1.msra.mxu0 0.0
        %244 = vmatprep.subr.mxu0 0.0
        %245 = vmatpush1.msra.mxu0 0.0
        %246 = vmatprep.subr.mxu0 0.0
        %247 = vmatpush1.msra.mxu0 0.0
        %248 = vmatprep.subr.mxu0 0.0
        %249 = vmatpush1.msra.mxu0 0.0
        %250 = vmatprep.subr.mxu0 0.0
        %251 = vmatpush1.msra.mxu0 0.0
        %252 = vmatprep.subr.mxu0 0.0
        %253 = vmatpush1.msra.mxu0 0.0
        %254 = vmatprep.subr.mxu0 0.0
        %255 = vmatpush1.msra.mxu0 0.0
        %256 = vmatprep.subr.mxu0 0.0
        %257 = vmatpush1.msra.mxu0 0.0
        %258 = vmatprep.subr.mxu0 0.0
        %259 = vmatpush1.msra.mxu0 0.0
        %260 = vmatprep.subr.mxu0 0.0
        %261 = vmatpush1.msra.mxu0 0.0
        %262 = vmatprep.subr.mxu0 0.0
        %263 = vmatpush1.msra.mxu0 0.0
        %264 = vmatprep.subr.mxu0 0.0
        %265 = vmatpush1.msra.mxu0 0.0
        %266 = vmatprep.subr.mxu0 0.0
        %267 = vmatpush1.msra.mxu0 0.0
        %268 = vmatprep.subr.mxu0 0.0
        %269 = vmatpush1.msra.mxu0 0.0
        %270 = vmatprep.subr.mxu0 0.0
        %271 = vmatpush1.msra.mxu0 0.0
        %272 = vmatprep.subr.mxu0 0.0
        %273 = vmatpush1.msra.mxu0 0.0
        %274 = vmatprep.subr.mxu0 0.0
        %275 = vmatpush1.msra.mxu0 0.0
        %276 = vmatprep.subr.mxu0 0.0
        %277 = vmatpush1.msra.mxu0 0.0
        %278 = vmatprep.subr.mxu0 0.0
        %279 = vmatpush1.msra.mxu0 0.0
        %280 = vmatprep.subr.mxu0 0.0
        %281 = vmatpush1.msra.mxu0 0.0
        %282 = vmatprep.subr.mxu0 0.0
        %283 = vmatpush1.msra.mxu0 0.0
        %284 = vmatprep.subr.mxu0 0.0
        %285 = vmatpush1.msra.mxu0 0.0
        %286 = vmatprep.subr.mxu0 0.0
        %287 = vmatpush1.msra.mxu0 0.0
        %288 = vmatprep.subr.mxu0 0.0
        %289 = vmatpush1.msra.mxu0 0.0
        %290 = vmatprep.subr.mxu0 0.0
        %291 = vmatpush1.msra.mxu0 0.0
        %292 = vmatprep.subr.mxu0 0.0
        %293 = vmatpush1.msra.mxu0 0.0
        %294 = vmatprep.subr.mxu0 0.0
        %295 = vmatpush1.msra.mxu0 0.0
        %296 = vmatprep.subr.mxu0 0.0
        %297 = vmatpush1.msra.mxu0 0.0
        %298 = vmatprep.mubr.f32.mxu0 0.0
        %299 = vmatmul.mubr.f32.gmra.mrb[0].mxu0 %v229
        %v300 = vpop.f32.mrb[0].mxu0
        %v301 = vadd.f32 %v220, %v300
        %v302 = vpop.f32.mrb[0].mxu0
        %v303 = vadd.f32 %v220, %v302
        %304 = vmatprep.mubr.f32.mxu0 0.0
        %305 = vmatmul.mubr.f32.gmra.mrb[0].mxu0 %v232
        %v306 = vpop.f32.mrb[0].mxu0
        %v307 = vadd.f32 %v225, %v306
        %v308 = vpop.f32.mrb[0].mxu0
        %v309 = vadd.f32 %v225, %v308
        %310 = vdwg.mxu0
        %v311 = vmax.f32 %v301, 0.0
        %v312 = vmax.f32 %v303, 0.0
        %v313 = vmax.f32 %v307, 0.0
        %v314 = vmax.f32 %v309, 0.0
        %315 = vst [vmem:[%s206] sm:$0xff] %v311
        %316 = vst [vmem:[%s206 + $0x8] sm:$0xff] %v312
        %317 = vst [vmem:[%s206 + $0x10] sm:$0xff] %v313
        %318 = vst [vmem:[%s206 + $0x18] sm:$0xff] %v314
        %s319 = sand.u32 %s112, 1
        %s320 = scalar_lea.sflag [#allocation4], %s319
        %s321 = sand.u32 %s112, 1
        %s322 = smul.addr %s321, 32
        %s323 = scalar_lea.vmem [#allocation5], %s322
        // Predicated region
        $region37: #{tpu_custom_call.1} parent=31 // pred_check
          %p324 = pneg %p122
        $region38: #{tpu_custom_call.1} parent=31 // pred_check_branch
          %326 = sbr.rel (%p324) target = $region40
        $region39: #{tpu_custom_call.1} parent=31 // pred_region
          %s327 = smul.u32 2, %s25
          %s329 = ssub.s32 512, 512
          %330 = vsyncadd %s320, %s329
          %s331 = smul.addr %s24, 4
          %s332 = sadd.s32 %s327, %s331
          %s333 = smul.addr %s332, 128
          %s334 = scalar_lea.hbm %s3, %s333
          %s335 = sshll.u32 %s323, 4
          %s336 = int_to_ptr.vmem [resolvable:$true] %s335
          %341 = dma.vmem_to_hbm [thread:$0]  %s336, 512, %s334, %s320, 256, 256, 16
        $region40: #{tpu_custom_call.1} parent=31 // pred_fallthru
          _
      $region32: #{tpu_custom_call.1} parent=5 // pred_fallthru
        _
      %p342 = scmp.le.s32.totalorder 2, %s15
      // Predicated region
      $region41: #{tpu_custom_call.1} parent=5 // pred_check
        %p343 = pneg %p342
      $region42: #{tpu_custom_call.1} parent=5 // pred_check_branch
        %345 = sbr.rel (%p343) target = $region44
      $region43: #{tpu_custom_call.1} parent=5 // pred_region
        %s346 = ssub.s32 %s15, 2
        // Predicated region
        $region45: #{tpu_custom_call.1} parent=43 // pred_check
          %p347 = pneg %p128
        $region46: #{tpu_custom_call.1} parent=43 // pred_check_branch
          %349 = sbr.rel (%p347) target = $region48
        $region47: #{tpu_custom_call.1} parent=43 // pred_region
          %s350 = sand.u32 %s113, 1
          %s351 = scalar_lea.sflag [#allocation4], %s350
          %s352 = sand.u32 %s113, 1
          %s353 = smul.addr %s352, 32
          %s354 = scalar_lea.vmem [#allocation5], %s353
          %355 = dma.done %s351, 512
        $region48: #{tpu_custom_call.1} parent=43 // pred_fallthru
          _
      $region44: #{tpu_custom_call.1} parent=5 // pred_fallthru
        _
    $region6: #{tpu_custom_call.1} parent=1 // loop_footer
      %s19 = sadd.s32 1, %s15
    $region7: #{tpu_custom_call.1} parent=1 // loop_footer_branch
      %14 = sbr.rel target = $region3
    $region8: #{tpu_custom_call.1} parent=1 // loop_exit
      _
    %356 = vsyncpa [#allocation3], 1
    %s357 = scalar_lea.sflag [#allocation3], 1
    %358 = vsyncpa %s357, 1
    %359 = vsyncpa [#allocation4], 1
    %s360 = scalar_lea.sflag [#allocation4], 1
    %361 = vsyncpa %s360, 1

</llo_original>
